<compile_context>
chip_gen: v5e
topology: v5e:2x2
jax: 0.10.0
libtpu: 0.0.40
codegen_flags: <defaults>
</compile_context>

<pallas_src>
import functools

import jax
import jax.numpy as jnp
from jax.experimental import pallas as pl
from jax.experimental.pallas import tpu as pltpu

D_PAD = 128       # lane-padded feature width shared by all three layers
MAX_TILE_B = 512  # cap on batch rows per grid step


def _round_up(x, m):
    return ((x + m - 1) // m) * m


def _detect_num_tensorcores():
    # Best-effort: v7x has 2 TCs/chip; v5e/v6e have 1.  Fall back to 1.
    try:
        n = getattr(jax.devices()[0], "num_cores", None)
        return max(1, int(n)) if n else 1
    except Exception:
        return 1


_NUM_TC = _detect_num_tensorcores()


def _batch_tiling(batch):
    """Pad batch to the 8-row sublane floor and pick (b_pad, tile_b, n_tiles)."""
    b_base = _round_up(max(int(batch), 1), 8)
    # >=2 parallel tiles only on multi-TC chips and only for large batches;
    # otherwise one big tile minimizes the ~0.35us-per-step pipeline overhead.
    splits = 2 if (_NUM_TC >= 2 and b_base >= 256) else 1
    tile_b = min(_round_up(-(-b_base // splits), 8), MAX_TILE_B)
    n_tiles = -(-b_base // tile_b)
    return n_tiles * tile_b, tile_b, n_tiles


def mlp_kernel(x_ref, w_ref, b_ref, o_ref, xp_ref):
    # x_ref : (tile_b, in_dim) f32   -- raw, un-padded input lanes
    # w_ref : (3, 128, 128)    bf16  -- transposed (in, out) weights, resident
    # b_ref : (3, 1, 128)      f32   -- biases, resident
    # o_ref : (tile_b, 128)    f32   -- lane-dense output block
    # xp_ref: (tile_b, 128)    f32   -- VMEM scratch: lane-padded activations
    in_dim = x_ref.shape[1]
    # Zero-pad the narrow input block to 128 lanes entirely inside VMEM.
    xp_ref[...] = jnp.zeros_like(xp_ref)
    xp_ref[:, :in_dim] = x_ref[...]

    x = xp_ref[...].astype(jnp.bfloat16)
    h = jnp.dot(x, w_ref[0], preferred_element_type=jnp.float32) + b_ref[0]
    h = jnp.maximum(h, 0.0)
    h = jnp.dot(h.astype(jnp.bfloat16), w_ref[1],
                preferred_element_type=jnp.float32) + b_ref[1]
    h = jnp.maximum(h, 0.0)
    q = jnp.dot(h.astype(jnp.bfloat16), w_ref[2],
                preferred_element_type=jnp.float32) + b_ref[2]
    o_ref[...] = q.astype(o_ref.dtype)


@functools.partial(jax.jit, static_argnames=("output_size",))
def network_forward(state, w_stack, b_stack, output_size):
    """q_values = fc3(relu(fc2(relu(fc1(state))))) — one fused Pallas call."""
    B, in_dim = state.shape
    d_pad = w_stack.shape[-1]
    b_pad, tile_b, n_tiles = _batch_tiling(B)

    x = state.astype(jnp.float32)
    if b_pad != B:
        # Only the batch rows are padded (to the 8-row sublane floor / tile).
        x = jnp.pad(x, ((0, b_pad - B), (0, 0)))

    cost = pl.CostEstimate(
        flops=2 * 3 * b_pad * d_pad * d_pad,
        transcendentals=0,
        bytes_accessed=int(b_pad * in_dim * 4          # input stream
                           + 3 * d_pad * d_pad * 2     # bf16 weights
                           + 3 * d_pad * 4             # biases
                           + b_pad * d_pad * 4),       # output stream
    )

    out = pl.pallas_call(
        mlp_kernel,
        out_shape=jax.ShapeDtypeStruct((b_pad, d_pad), jnp.float32),
        grid=(n_tiles,),
        in_specs=[
            pl.BlockSpec((tile_b, in_dim), lambda i: (i, 0)),       # activations stream
            pl.BlockSpec((3, d_pad, d_pad), lambda i: (0, 0, 0)),   # weights resident
            pl.BlockSpec((3, 1, d_pad), lambda i: (0, 0, 0)),       # biases resident
        ],
        out_specs=pl.BlockSpec((tile_b, d_pad), lambda i: (i, 0)),
        scratch_shapes=[pltpu.VMEM((tile_b, d_pad), jnp.float32)],
        compiler_params=pltpu.CompilerParams(
            dimension_semantics=("parallel",)),
        cost_estimate=cost,
    )(x, w_stack, b_stack)

    # Slice back to the valid (B, output_size) q-values.
    return out[:B, :output_size]


def init_params(key, input_size, output_size, hidden_size=30, d_pad=D_PAD):
    """PyTorch nn.Linear default init, U(-1/sqrt(fan_in), 1/sqrt(fan_in)).

    Returns:
      (w_stack, b_stack): weights transposed to (in, out), zero-padded to
        (128,128), stacked to (3,128,128) and cast to bf16; biases padded and
        stacked to (3,1,128) in f32.
      raw: the un-padded f32 (w1,b1,w2,b2,w3,b3) for an independent reference.
    """
    def linear(k, fan_in, fan_out):
        kw, kb = jax.random.split(k)
        bound = float(fan_in) ** -0.5
        w = jax.random.uniform(kw, (fan_in, fan_out), jnp.float32, -bound, bound)
        b = jax.random.uniform(kb, (fan_out,), jnp.float32, -bound, bound)
        return w, b

    k1, k2, k3 = jax.random.split(key, 3)
    w1, b1 = linear(k1, input_size, hidden_size)
    w2, b2 = linear(k2, hidden_size, hidden_size)
    w3, b3 = linear(k3, hidden_size, output_size)

    def pad_w(w):
        return jnp.zeros((d_pad, d_pad), jnp.float32).at[:w.shape[0], :w.shape[1]].set(w)

    def pad_b(b):
        return jnp.zeros((1, d_pad), jnp.float32).at[0, :b.shape[0]].set(b)

    w_stack = jnp.stack([pad_w(w1), pad_w(w2), pad_w(w3)]).astype(jnp.bfloat16)
    b_stack = jnp.stack([pad_b(b1), pad_b(b2), pad_b(b3)])
    return (w_stack, b_stack), (w1, b1, w2, b2, w3, b3)


def reference_forward_bf16(state, w_stack, b_stack, output_size):
    """Same padded bf16/f32-accum math as the kernel (tight comparison)."""
    in_dim = state.shape[1]
    x = jnp.pad(state.astype(jnp.float32), ((0, 0), (0, D_PAD - in_dim)))
    h = jnp.dot(x.astype(jnp.bfloat16), w_stack[0],
                preferred_element_type=jnp.float32) + b_stack[0]
    h = jnp.maximum(h, 0.0)
    h = jnp.dot(h.astype(jnp.bfloat16), w_stack[1],
                preferred_element_type=jnp.float32) + b_stack[1]
    h = jnp.maximum(h, 0.0)
    q = jnp.dot(h.astype(jnp.bfloat16), w_stack[2],
                preferred_element_type=jnp.float32) + b_stack[2]
    return q[:, :output_size]


def reference_forward_f32(state, raw):
    """Exact un-padded f32 math of the PyTorch module (loose comparison)."""
    w1, b1, w2, b2, w3, b3 = raw
    h1 = jnp.maximum(state @ w1 + b1, 0.0)
    h2 = jnp.maximum(h1 @ w2 + b2, 0.0)
    return h2 @ w3 + b3


if __name__ == "__main__":
    input_size = 5    # RL state vector
    output_size = 3   # q-values over 3 actions (hidden_size fixed at 30)

    key = jax.random.PRNGKey(0)
    k_params, k_state = jax.random.split(key)
    (w_stack, b_stack), raw = init_params(k_params, input_size, output_size)

    # batch=1 exercises the 8-row sublane pad (acting); batch=64 a replay batch.
    for batch in (1, 64):
        k = jax.random.fold_in(k_state, batch)
        state = jax.random.normal(k, (batch, input_size), jnp.float32)

        q_values = network_forward(state, w_stack, b_stack, output_size=output_size)
        jax.block_until_ready(q_values)
        assert q_values.shape == (batch, output_size)

        ref_bf16 = reference_forward_bf16(state, w_stack, b_stack, output_size)
        ref_f32 = reference_forward_f32(state, raw)
        assert jnp.allclose(q_values, ref_bf16, atol=1e-3, rtol=1e-3), "bf16 ref mismatch"
        assert jnp.allclose(q_values, ref_f32, atol=5e-2, rtol=5e-2), "f32 ref mismatch"

    print("KERNEL_OK")
</pallas_src>

<mosaic_0001>
module attributes {stable_mosaic.version = 11 : i64} {
  func.func @mlp_kernel(%arg0: i32, %arg1: memref<8x5xf32, #tpu.memory_space<vmem>>, %arg2: memref<3x128x128xbf16, #tpu.memory_space<vmem>>, %arg3: memref<3x1x128xf32, #tpu.memory_space<vmem>>, %arg4: memref<8x128xf32, #tpu.memory_space<vmem>>, %arg5: memref<8x128xf32, #tpu.memory_space<vmem>>) attributes {dimension_semantics = [#tpu.dimension_semantics<parallel>], iteration_bounds = array<i64: 1>, scalar_prefetch = 0 : i64, scratch_operands = 1 : i64, tpu.core_type = #tpu.core_type<tc>, window_params = [{transform_indices = @transform_0, window_bounds = array<i64: 8, 5>}, {pipeline_mode = #tpu.pipeline_mode<synchronous>, transform_indices = @transform_1, window_bounds = array<i64: 3, 128, 128>}, {pipeline_mode = #tpu.pipeline_mode<synchronous>, transform_indices = @transform_2, window_bounds = array<i64: 3, 1, 128>}, {transform_indices = @transform_3, window_bounds = array<i64: 8, 128>}]} {
    %cst = arith.constant 0.000000e+00 : f32
    %0 = vector.broadcast %cst : f32 to vector<8x128xf32>
    %c0 = arith.constant 0 : index
    %c0_0 = arith.constant 0 : index
    %1 = vector.load %arg5[%c0, %c0_0] : memref<8x128xf32, #tpu.memory_space<vmem>>, vector<8x128xf32>
    tpu.vector_store %arg5[%c0, %c0_0], %0 {strides = array<i32>} : memref<8x128xf32, #tpu.memory_space<vmem>>, vector<8x128xf32>,
    %c0_1 = arith.constant 0 : index
    %c0_2 = arith.constant 0 : index
    %2 = vector.load %arg1[%c0_1, %c0_2] : memref<8x5xf32, #tpu.memory_space<vmem>>, vector<8x5xf32>
    %c0_3 = arith.constant 0 : index
    %c0_4 = arith.constant 0 : index
    %3 = vector.load %arg5[%c0_3, %c0_4] : memref<8x128xf32, #tpu.memory_space<vmem>>, vector<8x5xf32>
    tpu.vector_store %arg5[%c0_3, %c0_4], %2 {strides = array<i32>} : memref<8x128xf32, #tpu.memory_space<vmem>>, vector<8x5xf32>,
    %c0_5 = arith.constant 0 : index
    %c0_6 = arith.constant 0 : index
    %4 = vector.load %arg5[%c0_5, %c0_6] : memref<8x128xf32, #tpu.memory_space<vmem>>, vector<8x128xf32>
    %5 = arith.truncf %4 : vector<8x128xf32> to vector<8x128xbf16>
    %c0_7 = arith.constant 0 : index
    %c0_8 = arith.constant 0 : index
    %c0_9 = arith.constant 0 : index
    %6 = vector.load %arg2[%c0_7, %c0_8, %c0_9] : memref<3x128x128xbf16, #tpu.memory_space<vmem>>, vector<1x128x128xbf16>
    %7 = vector.shape_cast %6 : vector<1x128x128xbf16> to vector<128x128xbf16>
    %cst_10 = arith.constant dense<0.000000e+00> : vector<8x128xf32>
    %8 = tpu.matmul %5, %7, %cst_10 {dimension_numbers = #tpu.dot_dimension_numbers<[1], [0], [0], [1], [0, 0, 1, 1], [], []>} : vector<8x128xbf16>, vector<128x128xbf16>, vector<8x128xf32> -> vector<8x128xf32>
    %c0_11 = arith.constant 0 : index
    %c0_12 = arith.constant 0 : index
    %c0_13 = arith.constant 0 : index
    %9 = vector.load %arg3[%c0_11, %c0_12, %c0_13] : memref<3x1x128xf32, #tpu.memory_space<vmem>>, vector<1x1x128xf32>
    %10 = vector.shape_cast %9 : vector<1x1x128xf32> to vector<1x128xf32>
    %11 = vector.broadcast %10 : vector<1x128xf32> to vector<8x128xf32>
    %12 = arith.addf %8, %11 : vector<8x128xf32>
    %cst_14 = arith.constant 0.000000e+00 : f32
    %13 = vector.broadcast %cst_14 : f32 to vector<8x128xf32>
    %14 = arith.maximumf %12, %13 : vector<8x128xf32>
    %15 = arith.truncf %14 : vector<8x128xf32> to vector<8x128xbf16>
    %c1 = arith.constant 1 : index
    %c0_15 = arith.constant 0 : index
    %c0_16 = arith.constant 0 : index
    %16 = vector.load %arg2[%c1, %c0_15, %c0_16] : memref<3x128x128xbf16, #tpu.memory_space<vmem>>, vector<1x128x128xbf16>
    %17 = vector.shape_cast %16 : vector<1x128x128xbf16> to vector<128x128xbf16>
    %cst_17 = arith.constant dense<0.000000e+00> : vector<8x128xf32>
    %18 = tpu.matmul %15, %17, %cst_17 {dimension_numbers = #tpu.dot_dimension_numbers<[1], [0], [0], [1], [0, 0, 1, 1], [], []>} : vector<8x128xbf16>, vector<128x128xbf16>, vector<8x128xf32> -> vector<8x128xf32>
    %c1_18 = arith.constant 1 : index
    %c0_19 = arith.constant 0 : index
    %c0_20 = arith.constant 0 : index
    %19 = vector.load %arg3[%c1_18, %c0_19, %c0_20] : memref<3x1x128xf32, #tpu.memory_space<vmem>>, vector<1x1x128xf32>
    %20 = vector.shape_cast %19 : vector<1x1x128xf32> to vector<1x128xf32>
    %21 = vector.broadcast %20 : vector<1x128xf32> to vector<8x128xf32>
    %22 = arith.addf %18, %21 : vector<8x128xf32>
    %cst_21 = arith.constant 0.000000e+00 : f32
    %23 = vector.broadcast %cst_21 : f32 to vector<8x128xf32>
    %24 = arith.maximumf %22, %23 : vector<8x128xf32>
    %25 = arith.truncf %24 : vector<8x128xf32> to vector<8x128xbf16>
    %c2 = arith.constant 2 : index
    %c0_22 = arith.constant 0 : index
    %c0_23 = arith.constant 0 : index
    %26 = vector.load %arg2[%c2, %c0_22, %c0_23] : memref<3x128x128xbf16, #tpu.memory_space<vmem>>, vector<1x128x128xbf16>
    %27 = vector.shape_cast %26 : vector<1x128x128xbf16> to vector<128x128xbf16>
    %cst_24 = arith.constant dense<0.000000e+00> : vector<8x128xf32>
    %28 = tpu.matmul %25, %27, %cst_24 {dimension_numbers = #tpu.dot_dimension_numbers<[1], [0], [0], [1], [0, 0, 1, 1], [], []>} : vector<8x128xbf16>, vector<128x128xbf16>, vector<8x128xf32> -> vector<8x128xf32>
    %c2_25 = arith.constant 2 : index
    %c0_26 = arith.constant 0 : index
    %c0_27 = arith.constant 0 : index
    %29 = vector.load %arg3[%c2_25, %c0_26, %c0_27] : memref<3x1x128xf32, #tpu.memory_space<vmem>>, vector<1x1x128xf32>
    %30 = vector.shape_cast %29 : vector<1x1x128xf32> to vector<1x128xf32>
    %31 = vector.broadcast %30 : vector<1x128xf32> to vector<8x128xf32>
    %32 = arith.addf %28, %31 : vector<8x128xf32>
    %c0_28 = arith.constant 0 : index
    %c0_29 = arith.constant 0 : index
    %33 = vector.load %arg4[%c0_28, %c0_29] : memref<8x128xf32, #tpu.memory_space<vmem>>, vector<8x128xf32>
    tpu.vector_store %arg4[%c0_28, %c0_29], %32 {strides = array<i32>} : memref<8x128xf32, #tpu.memory_space<vmem>>, vector<8x128xf32>,
    return
  }
  func.func @transform_0(%arg0: i32) -> (i32, i32) {
    %c0_i32 = arith.constant 0 : i32
    %c0_i32_0 = arith.constant 0 : i32
    return %arg0, %c0_i32 : i32, i32
  }
  func.func @transform_1(%arg0: i32) -> (i32, i32, i32) {
    %c0_i32 = arith.constant 0 : i32
    %c0_i32_0 = arith.constant 0 : i32
    %c0_i32_1 = arith.constant 0 : i32
    %c0_i32_2 = arith.constant 0 : i32
    return %c0_i32, %c0_i32_0, %c0_i32_1 : i32, i32, i32
  }
  func.func @transform_2(%arg0: i32) -> (i32, i32, i32) {
    %c0_i32 = arith.constant 0 : i32
    %c0_i32_0 = arith.constant 0 : i32
    %c0_i32_1 = arith.constant 0 : i32
    %c0_i32_2 = arith.constant 0 : i32
    return %c0_i32, %c0_i32_0, %c0_i32_1 : i32, i32, i32
  }
  func.func @transform_3(%arg0: i32) -> (i32, i32) {
    %c0_i32 = arith.constant 0 : i32
    %c0_i32_0 = arith.constant 0 : i32
    return %arg0, %c0_i32 : i32, i32
  }
}

</mosaic_0001>

<llo_original>
// kernel: network_forward.1
$region0: #{network_forward.1}
  #allocation0 [shape = 'u32[]', space=smem, size = 0x4, offset = 0x4, fixed_abs, tag = 'smem constant byte address 0x4 - core index']
  #allocation1 [shape = 'u32[72,128]{1,0:T(1,128)}', space=vmem, size = 0x9000, scoped, tag = 'internal scratch']
  #allocation2 [shape = 'f32[8,128]{1,0:T(8,128)}', space=vmem, size = 0x1000, scoped, tag = 'scratch operand']
  %s0 = inlined_call_operand.vmem [shape: f32[8,5], index: 0, kind: input, shape index: {}]
  %s1 = inlined_call_operand.hbm [shape: bf16[3,128,128], index: 1, kind: input, shape index: {}]
  %s2 = inlined_call_operand.vmem [shape: f32[3,1,128], index: 2, kind: input, shape index: {}]
  %s3 = inlined_call_operand.vmem [shape: f32[8,128], index: 3, kind: output, shape index: {}]
  %s4 = sld [smem:[#allocation0]]
  $region26: #{network_forward.1} parent=0
    _
  %s6 = ssub.s32 1, %s4
  %s7 = scalar_select 0, %s6, %s4
  $region1: #{network_forward.1} parent=0
    #allocation3 [shape = 'u8[98304]{0}', space=vmem, size = 0x18000, scoped, tag = 'input window, operand 1, single buffered']
    #allocation4 [shape = 's32[1]{0}', space=sflag, size = 0x4, scoped, tag = 'scoped memory for network_forward.1']
    %8 = vsyncpa [#allocation4], 0
    // Predicated region
    $region2: #{network_forward.1} parent=1 // pred_check
      _
    $region3: #{network_forward.1} parent=1 // pred_check_branch
      %10 = sbr.rel (0) target = $region5
    $region4: #{network_forward.1} parent=1 // pred_region
      _
    $region5: #{network_forward.1} parent=1 // pred_fallthru
      _
    // Predicated region
    $region6: #{network_forward.1} parent=1 // pred_check
      _
    $region7: #{network_forward.1} parent=1 // pred_check_branch
      %12 = sbr.rel (0) target = $region9
    $region8: #{network_forward.1} parent=1 // pred_region
      %14 = vsyncadd [#allocation4], 0
      %s15 = sshll.u32 %s1, 4
      %s16 = int_to_ptr.hbm [resolvable:$true] %s15
      %s17 = sshll.u32 [#allocation3], 4
      %s18 = int_to_ptr.vmem [resolvable:$true] %s17
      %23 = dma.hbm_to_vmem [thread:$0]  %s16, 3072, %s18, [#allocation4], 64, 64, 4
    $region9: #{network_forward.1} parent=1 // pred_fallthru
      _
    // Predicated region
    $region10: #{network_forward.1} parent=1 // pred_check
      _
    $region11: #{network_forward.1} parent=1 // pred_check_branch
      %25 = sbr.rel (0) target = $region13
    $region12: #{network_forward.1} parent=1 // pred_region
      _
    $region13: #{network_forward.1} parent=1 // pred_fallthru
      _
    // Predicated region
    $region14: #{network_forward.1} parent=1 // pred_check
      _
    $region15: #{network_forward.1} parent=1 // pred_check_branch
      %27 = sbr.rel (0) target = $region17
    $region16: #{network_forward.1} parent=1 // pred_region
      %29 = dma.done [#allocation4], 3072
    $region17: #{network_forward.1} parent=1 // pred_fallthru
      _
    %30 = vst [vmem:[#allocation2] sm:$0xff] 0.0
    %v31 = vld [vmem:[%s0] sm:$0xff]
    %vm32 = vcmask 39936
    %33 = vst.msk [vmem:[#allocation2] sm:$0xff] %vm32, %v31
    %v34 = vld [vmem:[#allocation2] sm:$0xff]
    %v35 = vpack.c.bf16 %v34, %v34
    %v36 = vld [vmem:[#allocation3] sm:$0xf]
    %v37 = vld [vmem:[#allocation3 + $0x4] sm:$0xf]
    %v38 = vld [vmem:[#allocation3 + $0x8] sm:$0xf]
    %v39 = vld [vmem:[#allocation3 + $0xc] sm:$0xf]
    %v40 = vld [vmem:[#allocation3 + $0x10] sm:$0xf]
    %v41 = vld [vmem:[#allocation3 + $0x14] sm:$0xf]
    %v42 = vld [vmem:[#allocation3 + $0x18] sm:$0xf]
    %v43 = vld [vmem:[#allocation3 + $0x1c] sm:$0xf]
    %v44 = vld [vmem:[#allocation3 + $0x20] sm:$0xf]
    %v45 = vld [vmem:[#allocation3 + $0x24] sm:$0xf]
    %v46 = vld [vmem:[#allocation3 + $0x28] sm:$0xf]
    %v47 = vld [vmem:[#allocation3 + $0x2c] sm:$0xf]
    %v48 = vld [vmem:[#allocation3 + $0x30] sm:$0xf]
    %v49 = vld [vmem:[#allocation3 + $0x34] sm:$0xf]
    %v50 = vld [vmem:[#allocation3 + $0x38] sm:$0xf]
    %v51 = vld [vmem:[#allocation3 + $0x3c] sm:$0xf]
    %v52 = vld [vmem:[%s2] sm:$0x1]
    %v54 = vperm.slane %v52, 0
    %v72 = vunpack.c.l.b16 %v36
    %v73 = vunpack.c.l.b16 %v37
    %v74 = vunpack.c.l.b16 %v38
    %v75 = vunpack.c.l.b16 %v39
    %v76 = vunpack.c.l.b16 %v40
    %v77 = vunpack.c.l.b16 %v41
    %v78 = vunpack.c.l.b16 %v42
    %v79 = vunpack.c.l.b16 %v43
    %v80 = vunpack.c.l.b16 %v44
    %v81 = vunpack.c.l.b16 %v45
    %v82 = vunpack.c.l.b16 %v46
    %v83 = vunpack.c.l.b16 %v47
    %v84 = vunpack.c.l.b16 %v48
    %v85 = vunpack.c.l.b16 %v49
    %v86 = vunpack.c.l.b16 %v50
    %v87 = vunpack.c.l.b16 %v51
    %v88 = vpack.c.b16 %v73, %v72
    %v89 = vpack.c.b16 %v75, %v74
    %v90 = vpack.c.b16 %v77, %v76
    %v91 = vpack.c.b16 %v79, %v78
    %v92 = vpack.c.b16 %v81, %v80
    %v93 = vpack.c.b16 %v83, %v82
    %v94 = vpack.c.b16 %v85, %v84
    %v95 = vpack.c.b16 %v87, %v86
    %104 = vmatpush.bf16.msra.mxu0 %v95
    %105 = vmatpush.bf16.msra.mxu0 %v94
    %106 = vmatpush.bf16.msra.mxu0 %v93
    %107 = vmatpush.bf16.msra.mxu0 %v92
    %108 = vmatpush.bf16.msra.mxu0 %v91
    %109 = vmatpush.bf16.msra.mxu0 %v90
    %110 = vmatpush.bf16.msra.mxu0 %v89
    %111 = vmatpush.bf16.msra.mxu0 %v88
    %112 = vmatmul.bf16.gmra.mxu0 %v35
    %v113 = vpop.f32.mrf.mxu0
    %v114 = vadd.f32 %v54, %v113
    %v115 = vpop.f32.mrf.mxu0
    %116 = vdwg.mxu0
    %v117 = vmax.f32 %v114, 0.0
    %v118 = vpack.c.bf16 %v117, %v117
    %s119 = scalar_lea.vmem [#allocation3], 64
    %v120 = vld [vmem:[%s119] sm:$0xf]
    %v121 = vld [vmem:[%s119 + $0x4] sm:$0xf]
    %v122 = vld [vmem:[%s119 + $0x8] sm:$0xf]
    %v123 = vld [vmem:[%s119 + $0xc] sm:$0xf]
    %v124 = vld [vmem:[%s119 + $0x10] sm:$0xf]
    %v125 = vld [vmem:[%s119 + $0x14] sm:$0xf]
    %v126 = vld [vmem:[%s119 + $0x18] sm:$0xf]
    %v127 = vld [vmem:[%s119 + $0x1c] sm:$0xf]
    %v128 = vld [vmem:[%s119 + $0x20] sm:$0xf]
    %v129 = vld [vmem:[%s119 + $0x24] sm:$0xf]
    %v130 = vld [vmem:[%s119 + $0x28] sm:$0xf]
    %v131 = vld [vmem:[%s119 + $0x2c] sm:$0xf]
    %v132 = vld [vmem:[%s119 + $0x30] sm:$0xf]
    %v133 = vld [vmem:[%s119 + $0x34] sm:$0xf]
    %v134 = vld [vmem:[%s119 + $0x38] sm:$0xf]
    %v135 = vld [vmem:[%s119 + $0x3c] sm:$0xf]
    %s136 = scalar_lea.vmem %s2, 1
    %v137 = vld [vmem:[%s136] sm:$0x1]
    %v139 = vperm.slane %v137, 0
    %v157 = vunpack.c.l.b16 %v120
    %v158 = vunpack.c.l.b16 %v121
    %v159 = vunpack.c.l.b16 %v122
    %v160 = vunpack.c.l.b16 %v123
    %v161 = vunpack.c.l.b16 %v124
    %v162 = vunpack.c.l.b16 %v125
    %v163 = vunpack.c.l.b16 %v126
    %v164 = vunpack.c.l.b16 %v127
    %v165 = vunpack.c.l.b16 %v128
    %v166 = vunpack.c.l.b16 %v129
    %v167 = vunpack.c.l.b16 %v130
    %v168 = vunpack.c.l.b16 %v131
    %v169 = vunpack.c.l.b16 %v132
    %v170 = vunpack.c.l.b16 %v133
    %v171 = vunpack.c.l.b16 %v134
    %v172 = vunpack.c.l.b16 %v135
    %v173 = vpack.c.b16 %v158, %v157
    %v174 = vpack.c.b16 %v160, %v159
    %v175 = vpack.c.b16 %v162, %v161
    %v176 = vpack.c.b16 %v164, %v163
    %v177 = vpack.c.b16 %v166, %v165
    %v178 = vpack.c.b16 %v168, %v167
    %v179 = vpack.c.b16 %v170, %v169
    %v180 = vpack.c.b16 %v172, %v171
    %189 = vmatpush.bf16.msra.mxu0 %v180
    %190 = vmatpush.bf16.msra.mxu0 %v179
    %191 = vmatpush.bf16.msra.mxu0 %v178
    %192 = vmatpush.bf16.msra.mxu0 %v177
    %193 = vmatpush.bf16.msra.mxu0 %v176
    %194 = vmatpush.bf16.msra.mxu0 %v175
    %195 = vmatpush.bf16.msra.mxu0 %v174
    %196 = vmatpush.bf16.msra.mxu0 %v173
    %197 = vmatmul.bf16.gmra.mxu0 %v118
    %v198 = vpop.f32.mrf.mxu0
    %v199 = vadd.f32 %v139, %v198
    %v200 = vpop.f32.mrf.mxu0
    %201 = vdwg.mxu0
    %v202 = vmax.f32 %v199, 0.0
    %v203 = vpack.c.bf16 %v202, %v202
    %s204 = scalar_lea.vmem [#allocation3], 128
    %v205 = vld [vmem:[%s204] sm:$0xf]
    %v206 = vld [vmem:[%s204 + $0x4] sm:$0xf]
    %v207 = vld [vmem:[%s204 + $0x8] sm:$0xf]
    %v208 = vld [vmem:[%s204 + $0xc] sm:$0xf]
    %v209 = vld [vmem:[%s204 + $0x10] sm:$0xf]
    %v210 = vld [vmem:[%s204 + $0x14] sm:$0xf]
    %v211 = vld [vmem:[%s204 + $0x18] sm:$0xf]
    %v212 = vld [vmem:[%s204 + $0x1c] sm:$0xf]
    %v213 = vld [vmem:[%s204 + $0x20] sm:$0xf]
    %v214 = vld [vmem:[%s204 + $0x24] sm:$0xf]
    %v215 = vld [vmem:[%s204 + $0x28] sm:$0xf]
    %v216 = vld [vmem:[%s204 + $0x2c] sm:$0xf]
    %v217 = vld [vmem:[%s204 + $0x30] sm:$0xf]
    %v218 = vld [vmem:[%s204 + $0x34] sm:$0xf]
    %v219 = vld [vmem:[%s204 + $0x38] sm:$0xf]
    %v220 = vld [vmem:[%s204 + $0x3c] sm:$0xf]
    %s221 = scalar_lea.vmem %s2, 2
    %v222 = vld [vmem:[%s221] sm:$0x1]
    %v224 = vperm.slane %v222, 0
    %v242 = vunpack.c.l.b16 %v205
    %v243 = vunpack.c.l.b16 %v206
    %v244 = vunpack.c.l.b16 %v207
    %v245 = vunpack.c.l.b16 %v208
    %v246 = vunpack.c.l.b16 %v209
    %v247 = vunpack.c.l.b16 %v210
    %v248 = vunpack.c.l.b16 %v211
    %v249 = vunpack.c.l.b16 %v212
    %v250 = vunpack.c.l.b16 %v213
    %v251 = vunpack.c.l.b16 %v214
    %v252 = vunpack.c.l.b16 %v215
    %v253 = vunpack.c.l.b16 %v216
    %v254 = vunpack.c.l.b16 %v217
    %v255 = vunpack.c.l.b16 %v218
    %v256 = vunpack.c.l.b16 %v219
    %v257 = vunpack.c.l.b16 %v220
    %v258 = vpack.c.b16 %v243, %v242
    %v259 = vpack.c.b16 %v245, %v244
    %v260 = vpack.c.b16 %v247, %v246
    %v261 = vpack.c.b16 %v249, %v248
    %v262 = vpack.c.b16 %v251, %v250
    %v263 = vpack.c.b16 %v253, %v252
    %v264 = vpack.c.b16 %v255, %v254
    %v265 = vpack.c.b16 %v257, %v256
    %274 = vmatpush.bf16.msra.mxu0 %v265
    %275 = vmatpush.bf16.msra.mxu0 %v264
    %276 = vmatpush.bf16.msra.mxu0 %v263
    %277 = vmatpush.bf16.msra.mxu0 %v262
    %278 = vmatpush.bf16.msra.mxu0 %v261
    %279 = vmatpush.bf16.msra.mxu0 %v260
    %280 = vmatpush.bf16.msra.mxu0 %v259
    %281 = vmatpush.bf16.msra.mxu0 %v258
    %282 = vmatmul.bf16.gmra.mxu0 %v203
    %v283 = vpop.f32.mrf.mxu0
    %v284 = vadd.f32 %v224, %v283
    %v285 = vpop.f32.mrf.mxu0
    %286 = vdwg.mxu0
    %287 = vst [vmem:[%s3] sm:$0xff] %v284
    // Predicated region
    $region18: #{network_forward.1} parent=1 // pred_check
      _
    $region19: #{network_forward.1} parent=1 // pred_check_branch
      %289 = sbr.rel (0) target = $region21
    $region20: #{network_forward.1} parent=1 // pred_region
      _
    $region21: #{network_forward.1} parent=1 // pred_fallthru
      _
    // Predicated region
    $region22: #{network_forward.1} parent=1 // pred_check
      _
    $region23: #{network_forward.1} parent=1 // pred_check_branch
      %291 = sbr.rel (0) target = $region25
    $region24: #{network_forward.1} parent=1 // pred_region
      _
    $region25: #{network_forward.1} parent=1 // pred_fallthru
      _
    %292 = vsyncpa [#allocation4], 1

</llo_original>
